<compile_context>
chip_gen: v7x
topology: tpu7x:2x2x1
jax: 0.10.0
libtpu: 0.0.40
codegen_flags: <defaults>
</compile_context>

<pallas_src>
import functools

import jax
import jax.numpy as jnp
from jax import lax
from jax.experimental import pallas as pl
from jax.experimental.pallas import tpu as pltpu


def _round_up(x, m):
    return ((x + m - 1) // m) * m


def fasttext_kernel(ids_ref, table_ref, b_ref, out_ref):
    """One batch tile per grid step.

    ids_ref   : (TILE_B, S)     int32     token ids for this batch tile
    table_ref : (V, O_pad)      bfloat16  fused table (emb @ W^T) / S
    b_ref     : (1, O_pad)      float32   fc1 bias, lane padded
    out_ref   : (TILE_B, O_pad) float32   logits for this batch tile
    """
    tile_b, seq = ids_ref.shape
    vocab = table_ref.shape[0]

    iota_v = lax.broadcasted_iota(jnp.int32, (tile_b, vocab), 1)   # (TILE_B, V)
    counts0 = jnp.zeros((tile_b, vocab), jnp.int32)

    if seq <= 32:
        # Small static S: fully unrolled VPU compare+add, int32 accumulation.
        ids = ids_ref[...]                                         # (TILE_B, S)
        counts = counts0
        for s in range(seq):
            tok = ids[:, s:s + 1]                                  # (TILE_B, 1)
            counts = counts + (iota_v == tok).astype(jnp.int32)
    else:
        # Larger S: fori_loop bounds vreg live ranges; unroll for LLO visibility.
        def body(s, c):
            tok = ids_ref[:, pl.ds(s, 1)]                          # (TILE_B, 1)
            return c + (iota_v == tok).astype(jnp.int32)

        counts = lax.fori_loop(0, seq, body, counts0, unroll=True)

    # Single i32 -> bf16 cast right at the MXU input; f32 accumulation on MXU.
    logits = jnp.dot(counts.astype(table_ref.dtype), table_ref[...],
                     preferred_element_type=jnp.float32)
    out_ref[...] = (logits + b_ref[...]).astype(out_ref.dtype)


def make_fasttext_params(emb_table, fc1_weight, fc1_bias, seq_len,
                         table_dtype=jnp.bfloat16):
    """Precompute the fused, padded parameters once at model setup.

    emb_table : (V, H)  nn.Embedding weight
    fc1_weight: (O, H)  nn.Linear weight
    fc1_bias  : (O,)    nn.Linear bias
    """
    vocab, _hidden = emb_table.shape
    out_dim = fc1_weight.shape[0]
    o_pad = _round_up(max(out_dim, 128), 128)        # lane-dense output stores

    # Mean-pool and fc1 are both linear: fold fc1 (and the 1/S) into the table.
    logit_table = (emb_table.astype(jnp.float32)
                   @ fc1_weight.astype(jnp.float32).T) * (1.0 / seq_len)

    table_p = (jnp.zeros((vocab, o_pad), table_dtype)
               .at[:, :out_dim].set(logit_table.astype(table_dtype)))
    bias_p = (jnp.zeros((1, o_pad), jnp.float32)
              .at[:, :out_dim].set(fc1_bias.reshape(1, out_dim).astype(jnp.float32)))
    return table_p, bias_p, out_dim


@functools.partial(jax.jit, static_argnames=("out_dim",))
def fasttext_forward(ids, table_p, bias_p, *, out_dim):
    """ids: (B, S) int token ids; table_p/bias_p from make_fasttext_params."""
    batch, seq = ids.shape
    vocab, o_pad = table_p.shape

    # Fat tiles (low per-step overhead) but always >= 2 grid steps so both
    # v7x TensorCores get work on the "parallel" batch axis.
    tile_b = min(512, _round_up(max((batch + 1) // 2, 1), 8))
    b_pad = max(_round_up(batch, tile_b), 2 * tile_b)

    ids_p = (jnp.zeros((b_pad, seq), jnp.int32)
             .at[:batch].set(ids.astype(jnp.int32)))

    # VMEM budget: double-buffered in/out tiles + in-kernel int32 counts tile.
    itemsize = jnp.dtype(table_p.dtype).itemsize
    vmem_need = (2 * (tile_b * seq * 4              # ids tile
                      + vocab * o_pad * itemsize    # fused table (resident)
                      + o_pad * 4                   # bias
                      + tile_b * o_pad * 4)         # out tile
                 + tile_b * vocab * 4)              # counts intermediate
    cp_kwargs = {"dimension_semantics": ("parallel",)}
    if vmem_need > (12 << 20):
        # Only raise the scoped-VMEM limit when the defaults would be exceeded.
        cp_kwargs["vmem_limit_bytes"] = int(min(2 * vmem_need, 64 << 20))

    out = pl.pallas_call(
        fasttext_kernel,
        out_shape=jax.ShapeDtypeStruct((b_pad, o_pad), jnp.float32),
        grid=(b_pad // tile_b,),
        in_specs=[
            pl.BlockSpec((tile_b, seq), lambda i: (i, 0)),    # ids tile
            pl.BlockSpec((vocab, o_pad), lambda i: (0, 0)),   # fused logit table
            pl.BlockSpec((1, o_pad), lambda i: (0, 0)),       # bias
        ],
        out_specs=pl.BlockSpec((tile_b, o_pad), lambda i: (i, 0)),
        compiler_params=pltpu.CompilerParams(**cp_kwargs),
    )(ids_p, table_p, bias_p)

    return out[:batch, :out_dim]


if __name__ == "__main__":
    # Small, deterministic shapes consistent with
    # Model(input_size, batch_size, hidden_dim, output_dim).forward(text).
    VOCAB = 100      # input_size
    BATCH = 2
    SEQ = 8
    HIDDEN = 32      # hidden_dim
    OUTPUT = 4       # output_dim

    key = jax.random.PRNGKey(0)
    k_emb, k_w, k_b, k_ids = jax.random.split(key, 4)

    # Synthetic parameters matching nn.Embedding / nn.Linear shapes.
    emb_table = jax.random.normal(k_emb, (VOCAB, HIDDEN), dtype=jnp.float32)
    fc1_w = jax.random.normal(k_w, (OUTPUT, HIDDEN), dtype=jnp.float32) * 0.1  # (O, H)
    fc1_b = jax.random.normal(k_b, (OUTPUT,), dtype=jnp.float32) * 0.1
    text = jax.random.randint(k_ids, (BATCH, SEQ), 0, VOCAB, dtype=jnp.int32)

    # One-time parameter fusion / padding (hoisted out of the per-call path).
    table_p, bias_p, out_dim = make_fasttext_params(emb_table, fc1_w, fc1_b, SEQ)

    out = fasttext_forward(text, table_p, bias_p, out_dim=out_dim)
    out = jax.block_until_ready(out)

    # Plain-JAX f32 reference of the PyTorch forward.
    ref = jnp.mean(emb_table[text], axis=1) @ fc1_w.T + fc1_b
    assert out.shape == (BATCH, OUTPUT)
    assert jnp.allclose(out, ref, atol=1e-2, rtol=1e-2), "mismatch vs reference"

    print("KERNEL_OK")
</pallas_src>

<mosaic_0001>
module attributes {stable_mosaic.version = 11 : i64} {
  func.func @fasttext_kernel(%arg0: i32, %arg1: memref<8x8xi32, #tpu.memory_space<vmem>>, %arg2: memref<100x128xbf16, #tpu.memory_space<vmem>>, %arg3: memref<1x128xf32, #tpu.memory_space<vmem>>, %arg4: memref<8x128xf32, #tpu.memory_space<vmem>>) attributes {dimension_semantics = [#tpu.dimension_semantics<parallel>], iteration_bounds = array<i64: 2>, scalar_prefetch = 0 : i64, scratch_operands = 0 : i64, tpu.core_type = #tpu.core_type<tc>, window_params = [{transform_indices = @transform_0, window_bounds = array<i64: 8, 8>}, {pipeline_mode = #tpu.pipeline_mode<synchronous>, transform_indices = @transform_1, window_bounds = array<i64: 100, 128>}, {pipeline_mode = #tpu.pipeline_mode<synchronous>, transform_indices = @transform_2, window_bounds = array<i64: 1, 128>}, {transform_indices = @transform_3, window_bounds = array<i64: 8, 128>}]} {
    %0 = tpu.iota {dimensions = array<i32: 1>} : vector<8x100xi32>
    %c0_i32 = arith.constant 0 : i32
    %1 = vector.broadcast %c0_i32 : i32 to vector<8x100xi32>
    %c0 = arith.constant 0 : index
    %c0_0 = arith.constant 0 : index
    %2 = vector.load %arg1[%c0, %c0_0] : memref<8x8xi32, #tpu.memory_space<vmem>>, vector<8x8xi32>
    %3 = vector.extract_strided_slice %2 {offsets = [0, 0], sizes = [8, 1], strides = [1, 1]} : vector<8x8xi32> to vector<8x1xi32>
    %4 = vector.broadcast %3 : vector<8x1xi32> to vector<8x100xi32>
    %5 = arith.cmpi eq, %0, %4 : vector<8x100xi32>
    %6 = arith.extui %5 : vector<8x100xi1> to vector<8x100xi32>
    %7 = arith.addi %1, %6 : vector<8x100xi32>
    %8 = vector.extract_strided_slice %2 {offsets = [0, 1], sizes = [8, 1], strides = [1, 1]} : vector<8x8xi32> to vector<8x1xi32>
    %9 = vector.broadcast %8 : vector<8x1xi32> to vector<8x100xi32>
    %10 = arith.cmpi eq, %0, %9 : vector<8x100xi32>
    %11 = arith.extui %10 : vector<8x100xi1> to vector<8x100xi32>
    %12 = arith.addi %7, %11 : vector<8x100xi32>
    %13 = vector.extract_strided_slice %2 {offsets = [0, 2], sizes = [8, 1], strides = [1, 1]} : vector<8x8xi32> to vector<8x1xi32>
    %14 = vector.broadcast %13 : vector<8x1xi32> to vector<8x100xi32>
    %15 = arith.cmpi eq, %0, %14 : vector<8x100xi32>
    %16 = arith.extui %15 : vector<8x100xi1> to vector<8x100xi32>
    %17 = arith.addi %12, %16 : vector<8x100xi32>
    %18 = vector.extract_strided_slice %2 {offsets = [0, 3], sizes = [8, 1], strides = [1, 1]} : vector<8x8xi32> to vector<8x1xi32>
    %19 = vector.broadcast %18 : vector<8x1xi32> to vector<8x100xi32>
    %20 = arith.cmpi eq, %0, %19 : vector<8x100xi32>
    %21 = arith.extui %20 : vector<8x100xi1> to vector<8x100xi32>
    %22 = arith.addi %17, %21 : vector<8x100xi32>
    %23 = vector.extract_strided_slice %2 {offsets = [0, 4], sizes = [8, 1], strides = [1, 1]} : vector<8x8xi32> to vector<8x1xi32>
    %24 = vector.broadcast %23 : vector<8x1xi32> to vector<8x100xi32>
    %25 = arith.cmpi eq, %0, %24 : vector<8x100xi32>
    %26 = arith.extui %25 : vector<8x100xi1> to vector<8x100xi32>
    %27 = arith.addi %22, %26 : vector<8x100xi32>
    %28 = vector.extract_strided_slice %2 {offsets = [0, 5], sizes = [8, 1], strides = [1, 1]} : vector<8x8xi32> to vector<8x1xi32>
    %29 = vector.broadcast %28 : vector<8x1xi32> to vector<8x100xi32>
    %30 = arith.cmpi eq, %0, %29 : vector<8x100xi32>
    %31 = arith.extui %30 : vector<8x100xi1> to vector<8x100xi32>
    %32 = arith.addi %27, %31 : vector<8x100xi32>
    %33 = vector.extract_strided_slice %2 {offsets = [0, 6], sizes = [8, 1], strides = [1, 1]} : vector<8x8xi32> to vector<8x1xi32>
    %34 = vector.broadcast %33 : vector<8x1xi32> to vector<8x100xi32>
    %35 = arith.cmpi eq, %0, %34 : vector<8x100xi32>
    %36 = arith.extui %35 : vector<8x100xi1> to vector<8x100xi32>
    %37 = arith.addi %32, %36 : vector<8x100xi32>
    %38 = vector.extract_strided_slice %2 {offsets = [0, 7], sizes = [8, 1], strides = [1, 1]} : vector<8x8xi32> to vector<8x1xi32>
    %39 = vector.broadcast %38 : vector<8x1xi32> to vector<8x100xi32>
    %40 = arith.cmpi eq, %0, %39 : vector<8x100xi32>
    %41 = arith.extui %40 : vector<8x100xi1> to vector<8x100xi32>
    %42 = arith.addi %37, %41 : vector<8x100xi32>
    %43 = arith.sitofp %42 : vector<8x100xi32> to vector<8x100xbf16>
    %c0_1 = arith.constant 0 : index
    %c0_2 = arith.constant 0 : index
    %44 = vector.load %arg2[%c0_1, %c0_2] : memref<100x128xbf16, #tpu.memory_space<vmem>>, vector<100x128xbf16>
    %cst = arith.constant dense<0.000000e+00> : vector<8x128xf32>
    %45 = tpu.matmul %43, %44, %cst {dimension_numbers = #tpu.dot_dimension_numbers<[1], [0], [0], [1], [0, 0, 1, 1], [], []>} : vector<8x100xbf16>, vector<100x128xbf16>, vector<8x128xf32> -> vector<8x128xf32>
    %c0_3 = arith.constant 0 : index
    %c0_4 = arith.constant 0 : index
    %46 = vector.load %arg3[%c0_3, %c0_4] : memref<1x128xf32, #tpu.memory_space<vmem>>, vector<1x128xf32>
    %47 = vector.broadcast %46 : vector<1x128xf32> to vector<8x128xf32>
    %48 = arith.addf %45, %47 : vector<8x128xf32>
    %c0_5 = arith.constant 0 : index
    %c0_6 = arith.constant 0 : index
    %49 = vector.load %arg4[%c0_5, %c0_6] : memref<8x128xf32, #tpu.memory_space<vmem>>, vector<8x128xf32>
    tpu.vector_store %arg4[%c0_5, %c0_6], %48 {strides = array<i32>} : memref<8x128xf32, #tpu.memory_space<vmem>>, vector<8x128xf32>,
    return
  }
  func.func @transform_0(%arg0: i32) -> (i32, i32) {
    %c0_i32 = arith.constant 0 : i32
    %c0_i32_0 = arith.constant 0 : i32
    return %arg0, %c0_i32 : i32, i32
  }
  func.func @transform_1(%arg0: i32) -> (i32, i32) {
    %c0_i32 = arith.constant 0 : i32
    %c0_i32_0 = arith.constant 0 : i32
    %c0_i32_1 = arith.constant 0 : i32
    return %c0_i32, %c0_i32_0 : i32, i32
  }
  func.func @transform_2(%arg0: i32) -> (i32, i32) {
    %c0_i32 = arith.constant 0 : i32
    %c0_i32_0 = arith.constant 0 : i32
    %c0_i32_1 = arith.constant 0 : i32
    return %c0_i32, %c0_i32_0 : i32, i32
  }
  func.func @transform_3(%arg0: i32) -> (i32, i32) {
    %c0_i32 = arith.constant 0 : i32
    %c0_i32_0 = arith.constant 0 : i32
    return %arg0, %c0_i32 : i32, i32
  }
}

</mosaic_0001>

<llo_original>
// kernel: fasttext_forward.1
$region0: #{fasttext_forward.1}
  #allocation0 [shape = 'u32[]', space=smem, size = 0x4, offset = 0x4, fixed_abs, tag = 'smem constant byte address 0x4 - core index']
  #allocation1 [shape = 'u32[144,128]{1,0:T(1,128)}', space=vmem, size = 0x12000, scoped, tag = 'internal scratch']
  %s0 = inlined_call_operand.vmem [shape: s32[16,8], index: 0, kind: input, shape index: {}]
  %s1 = inlined_call_operand.hbm [shape: bf16[100,128], index: 1, kind: input, shape index: {}]
  %s2 = inlined_call_operand.vmem [shape: f32[1,128], index: 2, kind: input, shape index: {}]
  %s3 = inlined_call_operand.vmem [shape: f32[16,128], index: 3, kind: output, shape index: {}]
  %s4 = sld [smem:[#allocation0]]
  $region49: #{fasttext_forward.1} parent=0
    _
  %s6 = ssub.s32 1, %s4
  %s7 = scalar_select 0, %s6, %s4
  $region1: #{fasttext_forward.1} parent=0
    #allocation2 [shape = 'u8[26624]{0}', space=vmem, size = 0x6800, scoped, tag = 'input window, operand 1, single buffered']
    #allocation3 [shape = 's32[2]{0}', space=sflag, size = 0x8, scoped, tag = 'scoped memory for fasttext_forward.1']
    %8 = vsyncpa [#allocation3], 0
    loop: start=0, step=1, limit=4
    $region2: #{fasttext_forward.1} parent=1 // loop_pre_header
      _
    $region3: #{fasttext_forward.1} parent=1 // loop_header
      %s10 = sphi 0, %s14
      %p11 = scmp.ge.s32.totalorder %s10, 4
      %s20 = sphi 0, %s22
      %s23 = sphi 0, %s20
      %s24 = sphi 0, %s23
      %s40 = sphi 0, %s24
      %s44 = sphi 0, %s44
      %s46 = sphi 0, %s44
      %s47 = sphi 0, %s46
      %s61 = sphi 0, %s47
      %s65 = sphi 0, %s65
      %s67 = sphi 0, %s65
      %s68 = sphi 0, %s67
      %s82 = sphi 0, %s68
      %s88 = sphi 0, %s90
      %s91 = sphi 0, %s88
      %s92 = sphi 0, %s91
      %s108 = sphi 0, %s92
    $region4: #{fasttext_forward.1} parent=1 // loop_header_branch
      %13 = sbr.rel (%p11) target = $region8
    $region5: #{fasttext_forward.1} parent=1 // loop_body
      %s15 = ssub.s32 %s10, 1
      %s16 = ssub.s32 %s10, 2
      %s17 = sadd.s32 %s10, 1
      %s18 = ssub.s32 %s10, %s17
      %p19 = scmp.eq.s32.totalorder %s18, 0
      %s21 = sadd.s32 %s20, 1
      %s22 = scalar_select %p19, %s20, %s21
      %p25 = pneg %p19
      %p26 = scmp.eq.s32.totalorder %s10, 1
      %p27 = por %p25, %p26
      %p28 = scmp.ne.s32.totalorder %s20, %s23
      %p29 = scmp.eq.s32.totalorder %s10, 0
      %p30 = por %p28, %p29
      %p31 = scmp.ne.s32.totalorder %s20, %s23
      %p32 = scmp.eq.s32.totalorder %s15, 1
      %p33 = por %p31, %p32
      %p34 = scmp.ne.s32.totalorder %s23, %s24
      %p35 = scmp.eq.s32.totalorder %s15, 0
      %p36 = por %p34, %p35
      %p37 = scmp.ne.s32.totalorder %s23, %s24
      %p38 = scmp.eq.s32.totalorder %s16, 1
      %p39 = por %p37, %p38
      %p41 = scmp.ne.s32.totalorder %s24, %s40
      %p42 = scmp.eq.s32.totalorder %s16, 0
      %p43 = por %p41, %p42
      %s45 = sadd.s32 %s44, 1
      %p48 = scmp.eq.s32.totalorder %s10, 1
      %p49 = scmp.ne.s32.totalorder %s44, %s46
      %p50 = scmp.eq.s32.totalorder %s10, 0
      %p51 = por %p49, %p50
      %p52 = scmp.ne.s32.totalorder %s44, %s46
      %p53 = scmp.eq.s32.totalorder %s15, 1
      %p54 = por %p52, %p53
      %p55 = scmp.ne.s32.totalorder %s46, %s47
      %p56 = scmp.eq.s32.totalorder %s15, 0
      %p57 = por %p55, %p56
      %p58 = scmp.ne.s32.totalorder %s46, %s47
      %p59 = scmp.eq.s32.totalorder %s16, 1
      %p60 = por %p58, %p59
      %p62 = scmp.ne.s32.totalorder %s47, %s61
      %p63 = scmp.eq.s32.totalorder %s16, 0
      %p64 = por %p62, %p63
      %s66 = sadd.s32 %s65, 1
      %p69 = scmp.eq.s32.totalorder %s10, 1
      %p70 = scmp.ne.s32.totalorder %s65, %s67
      %p71 = scmp.eq.s32.totalorder %s10, 0
      %p72 = por %p70, %p71
      %p73 = scmp.ne.s32.totalorder %s65, %s67
      %p74 = scmp.eq.s32.totalorder %s15, 1
      %p75 = por %p73, %p74
      %p76 = scmp.ne.s32.totalorder %s67, %s68
      %p77 = scmp.eq.s32.totalorder %s15, 0
      %p78 = por %p76, %p77
      %p79 = scmp.ne.s32.totalorder %s67, %s68
      %p80 = scmp.eq.s32.totalorder %s16, 1
      %p81 = por %p79, %p80
      %p83 = scmp.ne.s32.totalorder %s68, %s82
      %p84 = scmp.eq.s32.totalorder %s16, 0
      %p85 = por %p83, %p84
      %s86 = ssub.s32 %s10, %s17
      %p87 = scmp.eq.s32.totalorder %s86, 0
      %s89 = sadd.s32 %s88, 1
      %s90 = scalar_select %p87, %s88, %s89
      %p93 = pneg %p87
      %p94 = scmp.eq.s32.totalorder %s10, 1
      %p95 = por %p93, %p94
      %p96 = scmp.ne.s32.totalorder %s88, %s91
      %p97 = scmp.eq.s32.totalorder %s10, 0
      %p98 = por %p96, %p97
      %p99 = scmp.ne.s32.totalorder %s88, %s91
      %p100 = scmp.eq.s32.totalorder %s15, 1
      %p101 = por %p99, %p100
      %p102 = scmp.ne.s32.totalorder %s91, %s92
      %p103 = scmp.eq.s32.totalorder %s15, 0
      %p104 = por %p102, %p103
      %p105 = scmp.ne.s32.totalorder %s91, %s92
      %p106 = scmp.eq.s32.totalorder %s16, 1
      %p107 = por %p105, %p106
      %p109 = scmp.ne.s32.totalorder %s92, %s108
      %p110 = scmp.eq.s32.totalorder %s16, 0
      %p111 = por %p109, %p110
      %p112 = scmp.le.s32.totalorder 1, %s10
      %p113 = scmp.lt.s32.totalorder %s10, 3
      %p114 = pnand %p112, %p113
      %p115 = pneg %p114
      // Predicated region
      $region9: #{fasttext_forward.1} parent=5 // pred_check
        _
      $region10: #{fasttext_forward.1} parent=5 // pred_check_branch
        %117 = sbr.rel (%p114) target = $region12
      $region11: #{fasttext_forward.1} parent=5 // pred_region
        %s118 = ssub.s32 %s10, 1
        // Predicated region
        $region13: #{fasttext_forward.1} parent=11 // pred_check
          %p119 = pneg %p57
        $region14: #{fasttext_forward.1} parent=11 // pred_check_branch
          %121 = sbr.rel (%p119) target = $region16
        $region15: #{fasttext_forward.1} parent=11 // pred_region
          %s123 = ssub.s32 832, 832
          %124 = vsyncadd [#allocation3], %s123
          %s125 = sshll.u32 [#allocation2], 4
          %s126 = int_to_ptr.vmem [resolvable:$true] %s125
          %131 = dma.hbm_to_vmem [thread:$0]  %s1, 832, %s126, [#allocation3], 64, 64, 4
        $region16: #{fasttext_forward.1} parent=11 // pred_fallthru
          _
        // Predicated region
        $region17: #{fasttext_forward.1} parent=11 // pred_check
          %p132 = pneg %p78
        $region18: #{fasttext_forward.1} parent=11 // pred_check_branch
          %134 = sbr.rel (%p132) target = $region20
        $region19: #{fasttext_forward.1} parent=11 // pred_region
          _
        $region20: #{fasttext_forward.1} parent=11 // pred_fallthru
          _
      $region12: #{fasttext_forward.1} parent=5 // pred_fallthru
        _
      %p135 = scmp.lt.s32.totalorder %s10, 2
      // Predicated region
      $region21: #{fasttext_forward.1} parent=5 // pred_check
        %p136 = pneg %p135
      $region22: #{fasttext_forward.1} parent=5 // pred_check_branch
        %138 = sbr.rel (%p136) target = $region24
      $region23: #{fasttext_forward.1} parent=5 // pred_region
        // Predicated region
        $region25: #{fasttext_forward.1} parent=23 // pred_check
          %p139 = pneg %p30
        $region26: #{fasttext_forward.1} parent=23 // pred_check_branch
          %141 = sbr.rel (%p139) target = $region28
        $region27: #{fasttext_forward.1} parent=23 // pred_region
          %p142 = scmp.lt.s32.totalorder %s10, 1
          %s143 = scalar_select %p142, %s10, 1
          %s144 = smul.addr %s143, 8
          %s145 = scalar_lea.vmem %s0, %s144
        $region28: #{fasttext_forward.1} parent=23 // pred_fallthru
          _
      $region24: #{fasttext_forward.1} parent=5 // pred_fallthru
        _
      %p146 = scmp.le.s32.totalorder 1, %s10
      %p147 = scmp.lt.s32.totalorder %s10, 3
      %p148 = pnand %p146, %p147
      %p149 = pneg %p148
      // Predicated region
      $region29: #{fasttext_forward.1} parent=5 // pred_check
        _
      $region30: #{fasttext_forward.1} parent=5 // pred_check_branch
        %151 = sbr.rel (%p148) target = $region32
      $region31: #{fasttext_forward.1} parent=5 // pred_region
        %s152 = ssub.s32 %s10, 1
        // Predicated region
        $region33: #{fasttext_forward.1} parent=31 // pred_check
          %p153 = pneg %p57
        $region34: #{fasttext_forward.1} parent=31 // pred_check_branch
          %155 = sbr.rel (%p153) target = $region36
        $region35: #{fasttext_forward.1} parent=31 // pred_region
          %156 = dma.done [#allocation3], 832
        $region36: #{fasttext_forward.1} parent=31 // pred_fallthru
          _
        %p157 = scmp.lt.s32.totalorder %s15, 1
        %s158 = scalar_select %p157, %s15, 1
        %s159 = smul.addr %s158, 8
        %s160 = scalar_lea.vmem %s0, %s159
        %p161 = pneg %p36
        %p162 = pneg %p33
        %p163 = pneg %p57
        %p164 = pneg %p54
        %p165 = pneg %p78
        %p166 = pneg %p75
        %p167 = pneg %p104
        %p168 = pneg %p101
        %p169 = scmp.lt.s32.totalorder %s15, 1
        %s170 = scalar_select %p169, %s15, 1
        %s171 = smul.addr %s170, 8
        %s172 = scalar_lea.vmem %s3, %s171
        %p173 = scmp.lt.s32.totalorder %s15, 1
        %s174 = scalar_select %p173, %s15, 1
        %s175 = smul.addr %s174, 8
        %s176 = scalar_lea.vmem %s0, %s175
        %p177 = scmp.lt.s32.totalorder %s15, 1
        %s178 = scalar_select %p177, %s15, 1
        %s179 = smul.addr %s178, 8
        %s180 = scalar_lea.vmem %s3, %s179
        %v182 = vlaneseq
        %v183 = vand.u32 %v182, 127
        %v184 = vld [vmem:[%s176] sm:$0xff]
        %185 = vset.pattern.permute.xlu0 0
        %186 = vperm.xlu0 %185, %v184
        %v187 = vpop.permute.xlu0 %186
        %vm188 = vcmp.eq.s32.totalorder %v183, %v187
        %v189 = vsel %vm188, 1, 0
        %190 = vset.pattern.permute.xlu0 1
        %191 = vperm.xlu0 %190, %v184
        %v192 = vpop.permute.xlu0 %191
        %vm193 = vcmp.eq.s32.totalorder %v183, %v192
        %v194 = vsel %vm193, 1, 0
        %v195 = vadd.s32 %v189, %v194
        %196 = vset.pattern.permute.xlu0 2
        %197 = vperm.xlu0 %196, %v184
        %v198 = vpop.permute.xlu0 %197
        %vm199 = vcmp.eq.s32.totalorder %v183, %v198
        %v200 = vsel %vm199, 1, 0
        %v201 = vadd.s32 %v195, %v200
        %202 = vset.pattern.permute.xlu0 3
        %203 = vperm.xlu0 %202, %v184
        %v204 = vpop.permute.xlu0 %203
        %vm205 = vcmp.eq.s32.totalorder %v183, %v204
        %v206 = vsel %vm205, 1, 0
        %v207 = vadd.s32 %v201, %v206
        %208 = vset.pattern.permute.xlu0 4
        %209 = vperm.xlu0 %208, %v184
        %v210 = vpop.permute.xlu0 %209
        %vm211 = vcmp.eq.s32.totalorder %v183, %v210
        %v212 = vsel %vm211, 1, 0
        %v213 = vadd.s32 %v207, %v212
        %214 = vset.pattern.permute.xlu0 5
        %215 = vperm.xlu0 %214, %v184
        %v216 = vpop.permute.xlu0 %215
        %vm217 = vcmp.eq.s32.totalorder %v183, %v216
        %v218 = vsel %vm217, 1, 0
        %v219 = vadd.s32 %v213, %v218
        %220 = vset.pattern.permute.xlu0 6
        %221 = vperm.xlu0 %220, %v184
        %v222 = vpop.permute.xlu0 %221
        %vm223 = vcmp.eq.s32.totalorder %v183, %v222
        %v224 = vsel %vm223, 1, 0
        %v225 = vadd.s32 %v219, %v224
        %226 = vset.pattern.permute.xlu0 7
        %227 = vperm.xlu0 %226, %v184
        %v228 = vpop.permute.xlu0 %227
        %vm229 = vcmp.eq.s32.totalorder %v183, %v228
        %v230 = vsel %vm229, 1, 0
        %v231 = vadd.s32 %v225, %v230
        %v232 = vcvt.s32.f32 %v231
        %v233 = vpack.c.bf16 %v232, %v232
        %v234 = vld [vmem:[#allocation2] sm:$0xf]
        %v235 = vld [vmem:[#allocation2 + $0x4] sm:$0xf]
        %v236 = vld [vmem:[#allocation2 + $0x8] sm:$0xf]
        %v237 = vld [vmem:[#allocation2 + $0xc] sm:$0xf]
        %v238 = vld [vmem:[#allocation2 + $0x10] sm:$0xf]
        %v239 = vld [vmem:[#allocation2 + $0x14] sm:$0xf]
        %v240 = vld [vmem:[#allocation2 + $0x18] sm:$0xf]
        %v241 = vld [vmem:[#allocation2 + $0x1c] sm:$0xf]
        %v242 = vld [vmem:[#allocation2 + $0x20] sm:$0xf]
        %v243 = vld [vmem:[#allocation2 + $0x24] sm:$0xf]
        %v244 = vld [vmem:[#allocation2 + $0x28] sm:$0xf]
        %v245 = vld [vmem:[#allocation2 + $0x2c] sm:$0xf]
        %v246 = vld [vmem:[#allocation2 + $0x30] sm:$0x3]
        %v247 = vld [vmem:[%s2] sm:$0x1]
        %v249 = vlaneseq
        %v250 = vshrl.u32 %v249, 7
        %v251 = vsub.s32 0, %v250
        %v252 = vrot.slane %v247, %v251
        %v267 = vunpack.c.l.b16 %v234
        %v268 = vunpack.c.l.b16 %v235
        %v269 = vunpack.c.l.b16 %v236
        %v270 = vunpack.c.l.b16 %v237
        %v271 = vunpack.c.l.b16 %v238
        %v272 = vunpack.c.l.b16 %v239
        %v273 = vunpack.c.l.b16 %v240
        %v274 = vunpack.c.l.b16 %v241
        %v275 = vunpack.c.l.b16 %v242
        %v276 = vunpack.c.l.b16 %v243
        %v277 = vunpack.c.l.b16 %v244
        %v278 = vunpack.c.l.b16 %v245
        %v279 = vunpack.c.l.b16 %v246
        %v280 = vpack.c.b16 %v268, %v267
        %v281 = vpack.c.b16 %v270, %v269
        %v282 = vpack.c.b16 %v272, %v271
        %v283 = vpack.c.b16 %v274, %v273
        %v284 = vpack.c.b16 %v276, %v275
        %v285 = vpack.c.b16 %v278, %v277
        %v286 = vpack.c.b16 %v279, %v279
        %vm293 = vcmask 818176
        %v295 = vsel %vm293, %v233, 0
        %vm297 = vcmask 1041408
        %v299 = vsel %vm297, %v286, 0
        %301 = vmatprep.subr.bf16.mxu0 0
        %302 = vmatpush1.bf16.msra.mxu0 %v280
        %303 = vmatprep.subr.bf16.mxu0 0
        %304 = vmatpush1.bf16.msra.mxu0 %v281
        %305 = vmatprep.subr.bf16.mxu0 0
        %306 = vmatpush1.bf16.msra.mxu0 %v282
        %307 = vmatprep.subr.bf16.mxu0 0
        %308 = vmatpush1.bf16.msra.mxu0 %v283
        %309 = vmatprep.subr.bf16.mxu0 0
        %310 = vmatpush1.bf16.msra.mxu0 %v284
        %311 = vmatprep.subr.bf16.mxu0 0
        %312 = vmatpush1.bf16.msra.mxu0 %v285
        %313 = vmatprep.subr.bf16.mxu0 0
        %314 = vmatpush1.bf16.msra.mxu0 %v299
        %315 = vmatprep.subr.bf16.mxu0 0
        %316 = vmatpush1.bf16.msra.mxu0 0
        %317 = vmatprep.subr.bf16.mxu0 0
        %318 = vmatpush1.bf16.msra.mxu0 0
        %319 = vmatprep.subr.bf16.mxu0 0
        %320 = vmatpush1.bf16.msra.mxu0 0
        %321 = vmatprep.subr.bf16.mxu0 0
        %322 = vmatpush1.bf16.msra.mxu0 0
        %323 = vmatprep.subr.bf16.mxu0 0
        %324 = vmatpush1.bf16.msra.mxu0 0
        %325 = vmatprep.subr.bf16.mxu0 0
        %326 = vmatpush1.bf16.msra.mxu0 0
        %327 = vmatprep.subr.bf16.mxu0 0
        %328 = vmatpush1.bf16.msra.mxu0 0
        %329 = vmatprep.subr.bf16.mxu0 0
        %330 = vmatpush1.bf16.msra.mxu0 0
        %331 = vmatprep.subr.bf16.mxu0 0
        %332 = vmatpush1.bf16.msra.mxu0 0
        %333 = vmatprep.mubr.bf16.mxu0 0
        %334 = vmatmul.mubr.bf16.gmra.mrb[0].mxu0 %v295
        %v335 = vpop.f32.mrb[0].mxu0
        %v336 = vadd.f32 %v252, %v335
        %v337 = vpop.f32.mrb[0].mxu0
        %v338 = vpop.f32.mrb[0].mxu0
        %v339 = vpop.f32.mrb[0].mxu0
        %340 = vdwg.mxu0
        %341 = vst [vmem:[%s180] sm:$0xff] %v336
        %p342 = scmp.lt.s32.totalorder %s15, 1
        %s343 = scalar_select %p342, %s15, 1
        %s344 = smul.addr %s343, 8
        %s345 = scalar_lea.vmem %s3, %s344
        // Predicated region
        $region37: #{fasttext_forward.1} parent=31 // pred_check
          %p346 = pneg %p101
        $region38: #{fasttext_forward.1} parent=31 // pred_check_branch
          %348 = sbr.rel (%p346) target = $region40
        $region39: #{fasttext_forward.1} parent=31 // pred_region
          _
        $region40: #{fasttext_forward.1} parent=31 // pred_fallthru
          _
      $region32: #{fasttext_forward.1} parent=5 // pred_fallthru
        _
      %p349 = scmp.le.s32.totalorder 2, %s10
      // Predicated region
      $region41: #{fasttext_forward.1} parent=5 // pred_check
        %p350 = pneg %p349
      $region42: #{fasttext_forward.1} parent=5 // pred_check_branch
        %352 = sbr.rel (%p350) target = $region44
      $region43: #{fasttext_forward.1} parent=5 // pred_region
        %s353 = ssub.s32 %s10, 2
        // Predicated region
        $region45: #{fasttext_forward.1} parent=43 // pred_check
          %p354 = pneg %p107
        $region46: #{fasttext_forward.1} parent=43 // pred_check_branch
          %356 = sbr.rel (%p354) target = $region48
        $region47: #{fasttext_forward.1} parent=43 // pred_region
          %p357 = scmp.lt.s32.totalorder %s16, 1
          %s358 = scalar_select %p357, %s16, 1
          %s359 = smul.addr %s358, 8
          %s360 = scalar_lea.vmem %s3, %s359
        $region48: #{fasttext_forward.1} parent=43 // pred_fallthru
          _
      $region44: #{fasttext_forward.1} parent=5 // pred_fallthru
        _
    $region6: #{fasttext_forward.1} parent=1 // loop_footer
      %s14 = sadd.s32 1, %s10
    $region7: #{fasttext_forward.1} parent=1 // loop_footer_branch
      %9 = sbr.rel target = $region3
    $region8: #{fasttext_forward.1} parent=1 // loop_exit
      _
    %361 = vsyncpa [#allocation3], 1
    %s362 = scalar_lea.sflag [#allocation3], 1
    %363 = vsyncpa %s362, 1

</llo_original>
